<compile_context>
chip_gen: v5e
topology: v5e:2x2
jax: 0.10.0
libtpu: 0.0.40
codegen_flags: <defaults>
</compile_context>

<pallas_src>
import functools

import jax
import jax.numpy as jnp
from jax.experimental import pallas as pl
from jax.experimental.pallas import tpu as pltpu

HIDDEN_PAD = 128  # pad hidden dim to a full vreg lane width


# ----------------------------------------------------------------------------- kernel
def value_network_kernel(state_ref, act_ref, w1s_ref, w2_ref, consts_ref, b3_ref,
                         o_ref, *, one_hot_action, action_dim, tanh_dtype):
    # state_ref : (tb, state_dim) f32
    # act_ref   : (1, 1, tb) int32 indices   OR  (tb, action_dim) f32 dense actions
    # w1s_ref   : (state_dim, Hp) bf16       w2_ref : (Hp, Hp) bf16
    # consts_ref: (3 + action_dim, Hp) f32   rows = [b1, b2, w3_row, w1a_0 .. w1a_{A-1}]
    # b3_ref    : (1, 1) f32 in SMEM         o_ref  : (1, 1, tb) f32 (lane-dense)
    tb = state_ref.shape[0]
    hp = w2_ref.shape[0]

    b1 = consts_ref[0:1, :]         # (1, Hp) f32
    b2 = consts_ref[1:2, :]         # (1, Hp) f32
    w3 = consts_ref[2:3, :]         # (1, Hp) f32

    # ---- layer 1: single MXU batch sweep for the state part ----
    x = state_ref[...].astype(jnp.bfloat16)                              # (tb, S)
    h = jnp.dot(x, w1s_ref[...], preferred_element_type=jnp.float32)     # (tb, Hp) f32

    # ---- layer-1 action contribution (no second MXU M-sweep for the one-hot path) ----
    if one_hot_action:
        # Lane-dense indices -> per-row column; one_hot(a) @ w1a == w1a[a] (row gather).
        a_col = act_ref[...].reshape(tb, 1)                               # (tb, 1) i32
        if action_dim <= 16:
            # Tiny table: row gather via VPU selects (exact f32 rows).
            h_a = jnp.zeros((tb, hp), jnp.float32)
            for j in range(action_dim):                                   # static unroll
                h_a = jnp.where(a_col == j, consts_ref[3 + j:4 + j, :], h_a)
            h = h + h_a
        else:
            # Larger action spaces: fall back to an iota one-hot matmul.
            ids = jax.lax.broadcasted_iota(jnp.int32, (tb, action_dim), 1)
            a_feat = (ids == a_col).astype(jnp.bfloat16)
            w1a = consts_ref[3:3 + action_dim, :].astype(jnp.bfloat16)
            h = h + jnp.dot(a_feat, w1a, preferred_element_type=jnp.float32)
    else:
        # Dense / already-expanded action matrix.
        w1a = consts_ref[3:3 + action_dim, :].astype(jnp.bfloat16)
        h = h + jnp.dot(act_ref[...].astype(jnp.bfloat16), w1a,
                        preferred_element_type=jnp.float32)

    h = jnp.maximum(h + b1, 0.0)                                          # relu(linear1)
    # F.tanh(self.tanh(x)) -> tanh applied twice (faithful to the reference).
    h = jnp.tanh(jnp.tanh(h.astype(tanh_dtype)))

    # ---- layer 2 (bf16 operands, f32 accumulation / activation) ----
    h = jnp.dot(h.astype(jnp.bfloat16), w2_ref[...],
                preferred_element_type=jnp.float32)
    h = jnp.maximum(h + b2, 0.0)                                          # relu(linear2)

    # ---- layer 3 (N=1): VPU multiply + lane reduction, relaid out lane-dense so the
    # output tile is a dense (1, tb) row instead of a masked (tb, 1) column.
    val = jnp.sum(h * w3, axis=-1) + b3_ref[0, 0]                         # (tb,) f32
    o_ref[...] = val.reshape(1, 1, tb)


# ----------------------------------------------------------------------------- params
def init_params(key, state_dim, action_dim, hidden_size):
    """Synthetic init mimicking nn.Linear default (U[-1/sqrt(fan_in), +])."""
    d_in = state_dim + action_dim
    ks = jax.random.split(key, 6)

    def lin(kw, kb, fan_in, fan_out):
        bound = 1.0 / jnp.sqrt(fan_in)
        w = jax.random.uniform(kw, (fan_in, fan_out), jnp.float32, -bound, bound)
        b = jax.random.uniform(kb, (1, fan_out), jnp.float32, -bound, bound)
        return w, b

    w1, b1 = lin(ks[0], ks[1], d_in, hidden_size)
    w2, b2 = lin(ks[2], ks[3], hidden_size, hidden_size)
    w3, b3 = lin(ks[4], ks[5], hidden_size, 1)
    return (w1, b1, w2, b2, w3, b3)


def prepare_params(params, state_dim):
    """One-time repack: split w1 into state part (bf16 MXU weight) and action rows
    (exact f32, used as a select table), zero-pad hidden -> 128, and collapse all small
    f32 side constants into one resident block.  Zero padding is exact: relu(0)=0,
    tanh(0)=0, and zero w2 rows / w3 entries contribute nothing."""
    w1, b1, w2, b2, w3, b3 = params
    d_in, hidden = w1.shape
    action_dim = d_in - state_dim
    hp = max(HIDDEN_PAD, ((hidden + 127) // 128) * 128)

    def pad_to(a, rows, cols):
        return jnp.pad(a, ((0, rows - a.shape[0]), (0, cols - a.shape[1])))

    w1s = pad_to(w1[:state_dim], state_dim, hp).astype(jnp.bfloat16)
    w2p = pad_to(w2, hp, hp).astype(jnp.bfloat16)
    w1a = pad_to(w1[state_dim:], action_dim, hp).astype(jnp.float32)
    consts = jnp.concatenate([
        pad_to(b1.reshape(1, -1), 1, hp),
        pad_to(b2.reshape(1, -1), 1, hp),
        pad_to(w3.reshape(-1, 1).T, 1, hp),     # w3 as a (1, Hp) row
        w1a,                                    # action rows of linear1
    ], axis=0).astype(jnp.float32)              # (3 + action_dim, Hp)
    b3p = b3.reshape(1, 1).astype(jnp.float32)
    return (w1s, w2p, consts, b3p)


# ----------------------------------------------------------------------------- tiling
def _device_kind():
    try:
        return jax.devices()[0].device_kind.lower()
    except Exception:
        return ""


def _min_grid_tiles():
    # v7x (2 TensorCores/chip) and megacore parts want >=2 steps on the parallel axis;
    # v5e / v6e have a single TensorCore so a single fat tile is best.
    kind = _device_kind()
    if any(tag in kind for tag in ("v7", "7x", "v4", "v5p")):
        return 2
    return 1


def _choose_tiling(batch, cap, min_tiles):
    """Return (tile_rows, n_tiles, padded_batch).

    tile_rows is a multiple of 8 and <= cap.  Prefers a tile that exactly divides
    round_up(batch, 8) so no padded copy of the batch slab is materialized; falls back
    to a fat tile + padding when the divisor would force a pathological grid length.
    """
    b8 = max(8, ((batch + 7) // 8) * 8)
    cap = max(8, (cap // 8) * 8)
    if b8 < 8 * min_tiles:
        min_tiles = 1
    m = b8 // 8
    divisor_tile = 0
    for d in range(1, min(m, cap // 8) + 1):
        if m % d == 0 and (m // d) >= min_tiles:
            divisor_tile = 8 * d
    n_want = max(min_tiles, -(-b8 // cap))
    padded_tile = min(cap, ((-(-b8 // n_want) + 7) // 8) * 8)
    tile = divisor_tile if divisor_tile * 4 >= padded_tile else padded_tile
    n_tiles = -(-b8 // tile)
    return tile, n_tiles, n_tiles * tile


# ----------------------------------------------------------------------------- wrapper
def value_network_forward(state, action, kernel_params, *, block_b=2048,
                          tanh_dtype=jnp.float32):
    """state: (B, state_dim) f32; action: (B,)/(B,1) int indices (one-hot fused in the
    kernel) or an already-expanded (B, action_dim) float action matrix."""
    w1s, w2p, consts, b3p = kernel_params
    state = jnp.asarray(state, jnp.float32)
    B, state_dim = state.shape
    action_dim = consts.shape[0] - 3

    action = jnp.asarray(action)
    if action.ndim == 1:
        action = action[:, None]
    one_hot_action = (action.shape[1] == 1)

    # ---- batch tiling (divisor-of-batch tiles avoid padded slab copies) ----
    tb, n_tiles, b_pad = _choose_tiling(B, block_b, _min_grid_tiles())
    pad_rows = b_pad - B
    if pad_rows:
        state = jnp.pad(state, ((0, pad_rows), (0, 0)))

    if one_hot_action:
        idx = action[:, 0].astype(jnp.int32)
        if pad_rows:
            # -1 matches no class -> padded rows get a deterministic (discarded) value.
            idx = jnp.pad(idx, (0, pad_rows), constant_values=-1)
        act_in = idx.reshape(n_tiles, 1, tb)                       # lane-dense indices
        act_spec = pl.BlockSpec((1, 1, tb), lambda i: (i, 0, 0))
    else:
        act_in = action.reshape(B, -1).astype(jnp.float32)
        assert act_in.shape[1] == action_dim
        if pad_rows:
            act_in = jnp.pad(act_in, ((0, pad_rows), (0, 0)))
        act_spec = pl.BlockSpec((tb, action_dim), lambda i: (i, 0))

    resident = lambda a: pl.BlockSpec(a.shape, lambda i: (0, 0))   # weights stay resident

    out = pl.pallas_call(
        functools.partial(value_network_kernel,
                          one_hot_action=one_hot_action,
                          action_dim=action_dim,
                          tanh_dtype=tanh_dtype),
        out_shape=jax.ShapeDtypeStruct((n_tiles, 1, tb), jnp.float32),
        grid=(n_tiles,),
        in_specs=[
            pl.BlockSpec((tb, state_dim), lambda i: (i, 0)),       # state row tile
            act_spec,                                              # action (idx or dense)
            resident(w1s), resident(w2p), resident(consts),        # resident weights
            pl.BlockSpec(memory_space=pltpu.MemorySpace.SMEM),     # b3 scalar
        ],
        out_specs=pl.BlockSpec((1, 1, tb), lambda i: (i, 0, 0)),   # lane-dense output
        compiler_params=pltpu.CompilerParams(
            dimension_semantics=("parallel",),   # shard row tiles across TensorCores
        ),
    )(state, act_in, w1s, w2p, consts, b3p)

    return out.reshape(-1, 1)[:B]                                   # (B, 1) = x.view(-1,1)


# ----------------------------------------------------------------------------- reference
def reference_forward(state, action, params, *, match_kernel_precision=False,
                      tanh_dtype=jnp.float32):
    """Pure-JAX replica of the PyTorch forward.  With match_kernel_precision=True it
    replicates the kernel's math (bf16 MXU operands / f32 accumulation, exact f32
    action rows, f32 final layer)."""
    w1, b1, w2, b2, w3, b3 = params
    state = jnp.asarray(state, jnp.float32)
    sdim = state.shape[1]
    adim = w1.shape[0] - sdim

    a = jnp.asarray(action)
    if a.ndim == 1:
        a = a[:, None]
    if a.shape[1] == 1:
        a_oh = jax.nn.one_hot(a[:, 0].astype(jnp.int32), adim, dtype=jnp.float32)
    else:
        a_oh = a.reshape(state.shape[0], -1).astype(jnp.float32)

    if match_kernel_precision:
        dot = lambda p, q: jnp.dot(p.astype(jnp.bfloat16), q.astype(jnp.bfloat16),
                                   preferred_element_type=jnp.float32)
        h = dot(state, w1[:sdim])
        if a.shape[1] == 1:
            h = h + a_oh @ w1[sdim:]               # exact f32 row selection
        else:
            h = h + dot(a_oh, w1[sdim:])
        h = jnp.maximum(h + b1, 0.0)
        h = jnp.tanh(jnp.tanh(h.astype(tanh_dtype))).astype(jnp.float32)
        h = jnp.maximum(dot(h, w2) + b2, 0.0)
    else:
        x = jnp.concatenate([state, a_oh], axis=1)
        h = jnp.maximum(x @ w1 + b1, 0.0)
        h = jnp.tanh(jnp.tanh(h))
        h = jnp.maximum(h @ w2 + b2, 0.0)
    y = h @ w3 + b3.reshape(1, -1)
    return y.reshape(-1, 1)


# ----------------------------------------------------------------------------- demo
if __name__ == "__main__":
    # Shapes consistent with the module: n_servers=4, n_resources=2
    # -> state_dim = 4*2 + 2 + 1 = 11, action_dim = 4, hidden = 32.
    n_servers, n_resources = 4, 2
    state_dim = n_servers * n_resources + n_resources + 1
    action_dim = n_servers
    hidden_size = 32

    key = jax.random.PRNGKey(0)
    k_par, k_s1, k_a1, k_s2, k_a2 = jax.random.split(key, 5)

    params = init_params(k_par, state_dim, action_dim, hidden_size)
    kparams = prepare_params(params, state_dim)

    # --- tiny batch: the module's typical TD3 critic call (indices -> fused one-hot) ---
    B1 = 2
    state1 = jax.random.normal(k_s1, (B1, state_dim), dtype=jnp.float32)
    action1 = jax.random.randint(k_a1, (B1,), 0, action_dim, dtype=jnp.int32)

    fwd = jax.jit(functools.partial(value_network_forward, block_b=2048))
    out1 = jax.block_until_ready(fwd(state1, action1, kparams))
    ref1_match = reference_forward(state1, action1, params, match_kernel_precision=True)
    ref1_f32 = reference_forward(state1, action1, params)
    assert out1.shape == (B1, 1)
    assert jnp.allclose(out1, ref1_match, atol=2e-3, rtol=2e-3)   # same-precision check
    assert jnp.allclose(out1, ref1_f32, atol=3e-2)                # vs full-f32 reference

    # --- larger batch: multi-tile grid, lane-dense output blocks, batch padding path ---
    B2 = 300
    state2 = jax.random.normal(k_s2, (B2, state_dim), dtype=jnp.float32)
    action2 = jax.random.randint(k_a2, (B2,), 0, action_dim, dtype=jnp.int32)
    fwd2 = jax.jit(functools.partial(value_network_forward, block_b=128))
    out2 = jax.block_until_ready(fwd2(state2, action2, kparams))
    ref2 = reference_forward(state2, action2, params, match_kernel_precision=True)
    assert out2.shape == (B2, 1)
    assert jnp.allclose(out2, ref2, atol=2e-3, rtol=2e-3)

    # --- dense (already one-hot / continuous) action matrix path ---
    B3 = 16
    state3 = jax.random.normal(k_s2, (B3, state_dim), dtype=jnp.float32)
    idx3 = jax.random.randint(k_a1, (B3,), 0, action_dim, dtype=jnp.int32)
    action3 = jax.nn.one_hot(idx3, action_dim, dtype=jnp.float32)
    out3 = jax.block_until_ready(jax.jit(value_network_forward)(state3, action3, kparams))
    ref3 = reference_forward(state3, action3, params)
    assert out3.shape == (B3, 1)
    assert jnp.allclose(out3, ref3, atol=3e-2)

    print("KERNEL_OK")
</pallas_src>

<mosaic_0001>
module attributes {stable_mosaic.version = 11 : i64} {
  func.func @value_network_kernel(%arg0: i32, %arg1: memref<8x11xf32, #tpu.memory_space<vmem>>, %arg2: memref<1x1x8xi32, #tpu.memory_space<vmem>>, %arg3: memref<11x128xbf16, #tpu.memory_space<vmem>>, %arg4: memref<128x128xbf16, #tpu.memory_space<vmem>>, %arg5: memref<7x128xf32, #tpu.memory_space<vmem>>, %arg6: memref<1x1xf32, #tpu.memory_space<smem>>, %arg7: memref<1x1x8xf32, #tpu.memory_space<vmem>>) attributes {dimension_semantics = [#tpu.dimension_semantics<parallel>], iteration_bounds = array<i64: 1>, scalar_prefetch = 0 : i64, scratch_operands = 0 : i64, tpu.core_type = #tpu.core_type<tc>, window_params = [{transform_indices = @transform_0, window_bounds = array<i64: 8, 11>}, {transform_indices = @transform_1, window_bounds = array<i64: 1, 1, 8>}, {pipeline_mode = #tpu.pipeline_mode<synchronous>, transform_indices = @transform_2, window_bounds = array<i64: 11, 128>}, {pipeline_mode = #tpu.pipeline_mode<synchronous>, transform_indices = @transform_3, window_bounds = array<i64: 128, 128>}, {pipeline_mode = #tpu.pipeline_mode<synchronous>, transform_indices = @transform_4, window_bounds = array<i64: 7, 128>}, {transform_indices = @transform_5, window_bounds = array<i64: 1, 1>}, {transform_indices = @transform_6, window_bounds = array<i64: 1, 1, 8>}]} {
    %c0 = arith.constant 0 : index
    %c0_0 = arith.constant 0 : index
    %0 = vector.load %arg5[%c0, %c0_0] : memref<7x128xf32, #tpu.memory_space<vmem>>, vector<1x128xf32>
    %c1 = arith.constant 1 : index
    %c0_1 = arith.constant 0 : index
    %1 = vector.load %arg5[%c1, %c0_1] : memref<7x128xf32, #tpu.memory_space<vmem>>, vector<1x128xf32>
    %c2 = arith.constant 2 : index
    %c0_2 = arith.constant 0 : index
    %2 = vector.load %arg5[%c2, %c0_2] : memref<7x128xf32, #tpu.memory_space<vmem>>, vector<1x128xf32>
    %c0_3 = arith.constant 0 : index
    %c0_4 = arith.constant 0 : index
    %3 = vector.load %arg1[%c0_3, %c0_4] : memref<8x11xf32, #tpu.memory_space<vmem>>, vector<8x11xf32>
    %4 = arith.truncf %3 : vector<8x11xf32> to vector<8x11xbf16>
    %c0_5 = arith.constant 0 : index
    %c0_6 = arith.constant 0 : index
    %5 = vector.load %arg3[%c0_5, %c0_6] : memref<11x128xbf16, #tpu.memory_space<vmem>>, vector<11x128xbf16>
    %cst = arith.constant dense<0.000000e+00> : vector<8x128xf32>
    %6 = tpu.matmul %4, %5, %cst {dimension_numbers = #tpu.dot_dimension_numbers<[1], [0], [0], [1], [0, 0, 1, 1], [], []>} : vector<8x11xbf16>, vector<11x128xbf16>, vector<8x128xf32> -> vector<8x128xf32>
    %c0_7 = arith.constant 0 : index
    %c0_8 = arith.constant 0 : index
    %c0_9 = arith.constant 0 : index
    %7 = vector.load %arg2[%c0_7, %c0_8, %c0_9] : memref<1x1x8xi32, #tpu.memory_space<vmem>>, vector<1x1x8xi32>
    %8 = vector.shape_cast %7 : vector<1x1x8xi32> to vector<8x1xi32>
    %cst_10 = arith.constant 0.000000e+00 : f32
    %9 = vector.broadcast %cst_10 : f32 to vector<8x128xf32>
    %c0_i32 = arith.constant 0 : i32
    %10 = vector.broadcast %c0_i32 : i32 to vector<8x1xi32>
    %11 = arith.cmpi eq, %8, %10 : vector<8x1xi32>
    %c3 = arith.constant 3 : index
    %c0_11 = arith.constant 0 : index
    %12 = vector.load %arg5[%c3, %c0_11] : memref<7x128xf32, #tpu.memory_space<vmem>>, vector<1x128xf32>
    %13 = vector.shape_cast %11 : vector<8x1xi1> to vector<8x1xi1>
    %14 = vector.broadcast %13 : vector<8x1xi1> to vector<8x128xi1>
    %15 = vector.shape_cast %12 : vector<1x128xf32> to vector<1x128xf32>
    %16 = vector.broadcast %15 : vector<1x128xf32> to vector<8x128xf32>
    %17 = arith.select %14, %16, %9 : vector<8x128xi1>, vector<8x128xf32>
    %c1_i32 = arith.constant 1 : i32
    %18 = vector.broadcast %c1_i32 : i32 to vector<8x1xi32>
    %19 = arith.cmpi eq, %8, %18 : vector<8x1xi32>
    %c4 = arith.constant 4 : index
    %c0_12 = arith.constant 0 : index
    %20 = vector.load %arg5[%c4, %c0_12] : memref<7x128xf32, #tpu.memory_space<vmem>>, vector<1x128xf32>
    %21 = vector.shape_cast %19 : vector<8x1xi1> to vector<8x1xi1>
    %22 = vector.broadcast %21 : vector<8x1xi1> to vector<8x128xi1>
    %23 = vector.shape_cast %20 : vector<1x128xf32> to vector<1x128xf32>
    %24 = vector.broadcast %23 : vector<1x128xf32> to vector<8x128xf32>
    %25 = arith.select %22, %24, %17 : vector<8x128xi1>, vector<8x128xf32>
    %c2_i32 = arith.constant 2 : i32
    %26 = vector.broadcast %c2_i32 : i32 to vector<8x1xi32>
    %27 = arith.cmpi eq, %8, %26 : vector<8x1xi32>
    %c5 = arith.constant 5 : index
    %c0_13 = arith.constant 0 : index
    %28 = vector.load %arg5[%c5, %c0_13] : memref<7x128xf32, #tpu.memory_space<vmem>>, vector<1x128xf32>
    %29 = vector.shape_cast %27 : vector<8x1xi1> to vector<8x1xi1>
    %30 = vector.broadcast %29 : vector<8x1xi1> to vector<8x128xi1>
    %31 = vector.shape_cast %28 : vector<1x128xf32> to vector<1x128xf32>
    %32 = vector.broadcast %31 : vector<1x128xf32> to vector<8x128xf32>
    %33 = arith.select %30, %32, %25 : vector<8x128xi1>, vector<8x128xf32>
    %c3_i32 = arith.constant 3 : i32
    %34 = vector.broadcast %c3_i32 : i32 to vector<8x1xi32>
    %35 = arith.cmpi eq, %8, %34 : vector<8x1xi32>
    %c6 = arith.constant 6 : index
    %c0_14 = arith.constant 0 : index
    %36 = vector.load %arg5[%c6, %c0_14] : memref<7x128xf32, #tpu.memory_space<vmem>>, vector<1x128xf32>
    %37 = vector.shape_cast %35 : vector<8x1xi1> to vector<8x1xi1>
    %38 = vector.broadcast %37 : vector<8x1xi1> to vector<8x128xi1>
    %39 = vector.shape_cast %36 : vector<1x128xf32> to vector<1x128xf32>
    %40 = vector.broadcast %39 : vector<1x128xf32> to vector<8x128xf32>
    %41 = arith.select %38, %40, %33 : vector<8x128xi1>, vector<8x128xf32>
    %42 = arith.addf %6, %41 : vector<8x128xf32>
    %43 = vector.broadcast %0 : vector<1x128xf32> to vector<8x128xf32>
    %44 = arith.addf %42, %43 : vector<8x128xf32>
    %cst_15 = arith.constant 0.000000e+00 : f32
    %45 = vector.broadcast %cst_15 : f32 to vector<8x128xf32>
    %46 = arith.maximumf %44, %45 : vector<8x128xf32>
    %47 = math.tanh %46 : vector<8x128xf32>
    %48 = math.tanh %47 : vector<8x128xf32>
    %49 = arith.truncf %48 : vector<8x128xf32> to vector<8x128xbf16>
    %c0_16 = arith.constant 0 : index
    %c0_17 = arith.constant 0 : index
    %50 = vector.load %arg4[%c0_16, %c0_17] : memref<128x128xbf16, #tpu.memory_space<vmem>>, vector<128x128xbf16>
    %cst_18 = arith.constant dense<0.000000e+00> : vector<8x128xf32>
    %51 = tpu.matmul %49, %50, %cst_18 {dimension_numbers = #tpu.dot_dimension_numbers<[1], [0], [0], [1], [0, 0, 1, 1], [], []>} : vector<8x128xbf16>, vector<128x128xbf16>, vector<8x128xf32> -> vector<8x128xf32>
    %52 = vector.broadcast %1 : vector<1x128xf32> to vector<8x128xf32>
    %53 = arith.addf %51, %52 : vector<8x128xf32>
    %cst_19 = arith.constant 0.000000e+00 : f32
    %54 = vector.broadcast %cst_19 : f32 to vector<8x128xf32>
    %55 = arith.maximumf %53, %54 : vector<8x128xf32>
    %56 = vector.broadcast %2 : vector<1x128xf32> to vector<8x128xf32>
    %57 = arith.mulf %55, %56 : vector<8x128xf32>
    %cst_20 = arith.constant dense<0.000000e+00> : vector<8xf32>
    %58 = vector.multi_reduction <add>, %57, %cst_20 [1] : vector<8x128xf32> to vector<8xf32>
    %c0_21 = arith.constant 0 : index
    %c0_22 = arith.constant 0 : index
    %59 = memref.load %arg6[%c0_21, %c0_22] : memref<1x1xf32, #tpu.memory_space<smem>>
    %60 = vector.broadcast %59 : f32 to vector<8xf32>
    %61 = arith.addf %58, %60 : vector<8xf32>
    %62 = vector.shape_cast %61 : vector<8xf32> to vector<1x1x8xf32>
    %c0_23 = arith.constant 0 : index
    %c0_24 = arith.constant 0 : index
    %c0_25 = arith.constant 0 : index
    %63 = vector.load %arg7[%c0_23, %c0_24, %c0_25] : memref<1x1x8xf32, #tpu.memory_space<vmem>>, vector<1x1x8xf32>
    tpu.vector_store %arg7[%c0_23, %c0_24, %c0_25], %62 {strides = array<i32>} : memref<1x1x8xf32, #tpu.memory_space<vmem>>, vector<1x1x8xf32>,
    return
  }
  func.func @transform_0(%arg0: i32) -> (i32, i32) {
    %c0_i32 = arith.constant 0 : i32
    %c0_i32_0 = arith.constant 0 : i32
    return %arg0, %c0_i32 : i32, i32
  }
  func.func @transform_1(%arg0: i32) -> (i32, i32, i32) {
    %c0_i32 = arith.constant 0 : i32
    %c0_i32_0 = arith.constant 0 : i32
    %c0_i32_1 = arith.constant 0 : i32
    return %arg0, %c0_i32, %c0_i32_0 : i32, i32, i32
  }
  func.func @transform_2(%arg0: i32) -> (i32, i32) {
    %c0_i32 = arith.constant 0 : i32
    %c0_i32_0 = arith.constant 0 : i32
    %c0_i32_1 = arith.constant 0 : i32
    return %c0_i32, %c0_i32_0 : i32, i32
  }
  func.func @transform_3(%arg0: i32) -> (i32, i32) {
    %c0_i32 = arith.constant 0 : i32
    %c0_i32_0 = arith.constant 0 : i32
    %c0_i32_1 = arith.constant 0 : i32
    return %c0_i32, %c0_i32_0 : i32, i32
  }
  func.func @transform_4(%arg0: i32) -> (i32, i32) {
    %c0_i32 = arith.constant 0 : i32
    %c0_i32_0 = arith.constant 0 : i32
    %c0_i32_1 = arith.constant 0 : i32
    return %c0_i32, %c0_i32_0 : i32, i32
  }
  func.func @transform_5(%arg0: i32) -> (i32, i32) {
    %c0_i32 = arith.constant 0 : i32
    %c0_i32_0 = arith.constant 0 : i32
    %c0_i32_1 = arith.constant 0 : i32
    return %c0_i32, %c0_i32_0 : i32, i32
  }
  func.func @transform_6(%arg0: i32) -> (i32, i32, i32) {
    %c0_i32 = arith.constant 0 : i32
    %c0_i32_0 = arith.constant 0 : i32
    %c0_i32_1 = arith.constant 0 : i32
    return %arg0, %c0_i32, %c0_i32_0 : i32, i32, i32
  }
}

</mosaic_0001>

<llo_original>
// kernel: value_network_forward.1
$region0: #{value_network_forward.1}
  #allocation0 [shape = 'u32[]', space=smem, size = 0x4, offset = 0x4, fixed_abs, tag = 'smem constant byte address 0x4 - core index']
  #allocation1 [shape = 'u32[72,128]{1,0:T(1,128)}', space=vmem, size = 0x9000, scoped, tag = 'internal scratch']
  #allocation2 [shape = 'f32[1,1]{1,0:T(1,128)S(6)}', space=smem, size = 0x200, scoped, tag = 'scoped memory for value_network_forward.1']
  %s0 = inlined_call_operand.vmem [shape: f32[8,11], index: 0, kind: input, shape index: {}]
  %s1 = inlined_call_operand.vmem [shape: s32[1,1,8], index: 1, kind: input, shape index: {}]
  %s2 = inlined_call_operand.vmem [shape: bf16[11,128], index: 2, kind: input, shape index: {}]
  %s3 = inlined_call_operand.hbm [shape: bf16[128,128], index: 3, kind: input, shape index: {}]
  %s4 = inlined_call_operand.hbm [shape: f32[7,128], index: 4, kind: input, shape index: {}]
  %s5 = inlined_call_operand.<no memory space> [shape: f32[1,1], index: 5, kind: input, shape index: {}]
  %s6 = inlined_call_operand.vmem [shape: f32[1,1,8], index: 6, kind: output, shape index: {}]
  %s7 = sld [smem:[#allocation0]]
  $region42: #{value_network_forward.1} parent=0
    _
  %s9 = ssub.s32 1, %s7
  %s10 = scalar_select 0, %s9, %s7
  %11 = sst [smem:[#allocation2]] %s5
  $region1: #{value_network_forward.1} parent=0
    #allocation3 [shape = 'u8[32768]{0}', space=vmem, size = 0x8000, scoped, tag = 'input window, operand 3, single buffered']
    #allocation4 [shape = 's32[1]{0}', space=sflag, size = 0x4, scoped, tag = 'scoped memory for value_network_forward.1']
    #allocation5 [shape = 'u8[4096]{0}', space=vmem, size = 0x1000, scoped, tag = 'input window, operand 4, single buffered']
    #allocation6 [shape = 's32[1]{0}', space=sflag, size = 0x4, scoped, tag = 'scoped memory for value_network_forward.1']
    %12 = vsyncpa [#allocation4], 0
    %13 = vsyncpa [#allocation6], 0
    // Predicated region
    $region2: #{value_network_forward.1} parent=1 // pred_check
      _
    $region3: #{value_network_forward.1} parent=1 // pred_check_branch
      %15 = sbr.rel (0) target = $region5
    $region4: #{value_network_forward.1} parent=1 // pred_region
      _
    $region5: #{value_network_forward.1} parent=1 // pred_fallthru
      _
    // Predicated region
    $region6: #{value_network_forward.1} parent=1 // pred_check
      _
    $region7: #{value_network_forward.1} parent=1 // pred_check_branch
      %17 = sbr.rel (0) target = $region9
    $region8: #{value_network_forward.1} parent=1 // pred_region
      _
    $region9: #{value_network_forward.1} parent=1 // pred_fallthru
      _
    // Predicated region
    $region10: #{value_network_forward.1} parent=1 // pred_check
      _
    $region11: #{value_network_forward.1} parent=1 // pred_check_branch
      %19 = sbr.rel (0) target = $region13
    $region12: #{value_network_forward.1} parent=1 // pred_region
      _
    $region13: #{value_network_forward.1} parent=1 // pred_fallthru
      _
    // Predicated region
    $region14: #{value_network_forward.1} parent=1 // pred_check
      _
    $region15: #{value_network_forward.1} parent=1 // pred_check_branch
      %21 = sbr.rel (0) target = $region17
    $region16: #{value_network_forward.1} parent=1 // pred_region
      %23 = vsyncadd [#allocation4], 0
      %s24 = sshll.u32 %s3, 4
      %s25 = int_to_ptr.hbm [resolvable:$true] %s24
      %s26 = sshll.u32 [#allocation3], 4
      %s27 = int_to_ptr.vmem [resolvable:$true] %s26
      %32 = dma.hbm_to_vmem [thread:$0]  %s25, 1024, %s27, [#allocation4], 64, 64, 4
    $region17: #{value_network_forward.1} parent=1 // pred_fallthru
      _
    // Predicated region
    $region18: #{value_network_forward.1} parent=1 // pred_check
      _
    $region19: #{value_network_forward.1} parent=1 // pred_check_branch
      %34 = sbr.rel (0) target = $region21
    $region20: #{value_network_forward.1} parent=1 // pred_region
      %36 = vsyncadd [#allocation6], 0
      %s38 = sshll.u32 %s4, 4
      %s39 = int_to_ptr.hbm [resolvable:$true] %s38
      %s40 = sshll.u32 [#allocation5], 4
      %s41 = int_to_ptr.vmem [resolvable:$true] %s40
      %43 = dma.hbm_to_vmem [thread:$0]  %s39, 128, %s41, [#allocation6]
    $region21: #{value_network_forward.1} parent=1 // pred_fallthru
      _
    // Predicated region
    $region22: #{value_network_forward.1} parent=1 // pred_check
      _
    $region23: #{value_network_forward.1} parent=1 // pred_check_branch
      %45 = sbr.rel (0) target = $region25
    $region24: #{value_network_forward.1} parent=1 // pred_region
      _
    $region25: #{value_network_forward.1} parent=1 // pred_fallthru
      _
    // Predicated region
    $region26: #{value_network_forward.1} parent=1 // pred_check
      _
    $region27: #{value_network_forward.1} parent=1 // pred_check_branch
      %47 = sbr.rel (0) target = $region29
    $region28: #{value_network_forward.1} parent=1 // pred_region
      %49 = dma.done [#allocation4], 1024
    $region29: #{value_network_forward.1} parent=1 // pred_fallthru
      _
    // Predicated region
    $region30: #{value_network_forward.1} parent=1 // pred_check
      _
    $region31: #{value_network_forward.1} parent=1 // pred_check_branch
      %51 = sbr.rel (0) target = $region33
    $region32: #{value_network_forward.1} parent=1 // pred_region
      %53 = dma.done [#allocation6], 128
    $region33: #{value_network_forward.1} parent=1 // pred_fallthru
      _
    %v55 = vld [vmem:[#allocation5] sm:$0x1]
    %v56 = vld [vmem:[#allocation5 + $0x1] sm:$0x1]
    %v57 = vld [vmem:[#allocation5 + $0x2] sm:$0x1]
    %v58 = vld [vmem:[%s0] sm:$0xff]
    %v59 = vpack.c.bf16 %v58, %v58
    %v60 = vld [vmem:[%s2] sm:$0xf]
    %v61 = vld [vmem:[%s2 + $0x4] sm:$0x3]
    %v62 = vld [vmem:[%s1] sm:$0x1]
    %v63 = vperm.slane %v62, 0
    %v64 = vlaneseq
    %v65 = vshrl.u32 %v64, 7
    %67 = vset.pattern.permute.xlu0 %v65
    %68 = vperm.xlu0 %67, %v63
    %v69 = vpop.permute.xlu0 %68
    %vm70 = vcmp.eq.s32.totalorder %v69, 0
    %v71 = vld [vmem:[#allocation5 + $0x3] sm:$0x1]
    %v72 = vsel %vm70, 1, 0
    %vm73 = vcmp.eq.s32.totalorder %v72, 1
    %v74 = vperm.slane %v71, 0
    %v75 = vsel %vm73, %v74, 0.0
    %vm76 = vcmp.eq.s32.totalorder %v69, 1
    %v77 = vld [vmem:[#allocation5 + $0x4] sm:$0x1]
    %v78 = vsel %vm76, 1, 0
    %vm79 = vcmp.eq.s32.totalorder %v78, 1
    %v80 = vperm.slane %v77, 0
    %v81 = vsel %vm79, %v80, %v75
    %vm82 = vcmp.eq.s32.totalorder %v69, 2
    %v83 = vld [vmem:[#allocation5 + $0x5] sm:$0x1]
    %v84 = vsel %vm82, 1, 0
    %vm85 = vcmp.eq.s32.totalorder %v84, 1
    %v86 = vperm.slane %v83, 0
    %v87 = vsel %vm85, %v86, %v81
    %vm88 = vcmp.eq.s32.totalorder %v69, 3
    %v89 = vld [vmem:[#allocation5 + $0x6] sm:$0x1]
    %v90 = vsel %vm88, 1, 0
    %vm91 = vcmp.eq.s32.totalorder %v90, 1
    %v92 = vperm.slane %v89, 0
    %v93 = vsel %vm91, %v92, %v87
    %v96 = vunpack.c.l.b16 %v60
    %v97 = vunpack.c.l.b16 %v61
    %v98 = vpack.c.b16 %v97, %v96
    %vm99 = vcmask 89088
    %v101 = vsel %vm99, %v59, 0
    %vm103 = vcmask 1044480
    %vm104 = vcmask 1045504
    %v105 = vsel %vm103, 4294967295, 65535
    %v106 = vsel %vm104, %v105, 0
    %v108 = vand.u32 %v98, %v106
    %110 = vmatpush.bf16.msra.mxu0 0
    %111 = vmatpush.bf16.msra.mxu0 0
    %112 = vmatpush.bf16.msra.mxu0 0
    %113 = vmatpush.bf16.msra.mxu0 0
    %114 = vmatpush.bf16.msra.mxu0 0
    %115 = vmatpush.bf16.msra.mxu0 0
    %116 = vmatpush.bf16.msra.mxu0 0
    %117 = vmatpush.bf16.msra.mxu0 %v108
    %118 = vmatmul.bf16.gmra.mxu0 %v101
    %v119 = vpop.f32.mrf.mxu0
    %v120 = vadd.f32 %v93, %v119
    %v121 = vpop.f32.mrf.mxu0
    %122 = vdwg.mxu0
    %v123 = vperm.slane %v55, 0
    %v124 = vadd.f32 %v120, %v123
    %v125 = vmax.f32 %v124, 0.0
    %v126 = vtanh.pop %v125
    %v127 = vtanh.pop %v126
    %v128 = vpack.c.bf16 %v127, %v127
    %v129 = vld [vmem:[#allocation3] sm:$0xf]
    %v130 = vld [vmem:[#allocation3 + $0x4] sm:$0xf]
    %v131 = vld [vmem:[#allocation3 + $0x8] sm:$0xf]
    %v132 = vld [vmem:[#allocation3 + $0xc] sm:$0xf]
    %v133 = vld [vmem:[#allocation3 + $0x10] sm:$0xf]
    %v134 = vld [vmem:[#allocation3 + $0x14] sm:$0xf]
    %v135 = vld [vmem:[#allocation3 + $0x18] sm:$0xf]
    %v136 = vld [vmem:[#allocation3 + $0x1c] sm:$0xf]
    %v137 = vld [vmem:[#allocation3 + $0x20] sm:$0xf]
    %v138 = vld [vmem:[#allocation3 + $0x24] sm:$0xf]
    %v139 = vld [vmem:[#allocation3 + $0x28] sm:$0xf]
    %v140 = vld [vmem:[#allocation3 + $0x2c] sm:$0xf]
    %v141 = vld [vmem:[#allocation3 + $0x30] sm:$0xf]
    %v142 = vld [vmem:[#allocation3 + $0x34] sm:$0xf]
    %v143 = vld [vmem:[#allocation3 + $0x38] sm:$0xf]
    %v144 = vld [vmem:[#allocation3 + $0x3c] sm:$0xf]
    %v145 = vperm.slane %v56, 0
    %v162 = vunpack.c.l.b16 %v129
    %v163 = vunpack.c.l.b16 %v130
    %v164 = vunpack.c.l.b16 %v131
    %v165 = vunpack.c.l.b16 %v132
    %v166 = vunpack.c.l.b16 %v133
    %v167 = vunpack.c.l.b16 %v134
    %v168 = vunpack.c.l.b16 %v135
    %v169 = vunpack.c.l.b16 %v136
    %v170 = vunpack.c.l.b16 %v137
    %v171 = vunpack.c.l.b16 %v138
    %v172 = vunpack.c.l.b16 %v139
    %v173 = vunpack.c.l.b16 %v140
    %v174 = vunpack.c.l.b16 %v141
    %v175 = vunpack.c.l.b16 %v142
    %v176 = vunpack.c.l.b16 %v143
    %v177 = vunpack.c.l.b16 %v144
    %v178 = vpack.c.b16 %v163, %v162
    %v179 = vpack.c.b16 %v165, %v164
    %v180 = vpack.c.b16 %v167, %v166
    %v181 = vpack.c.b16 %v169, %v168
    %v182 = vpack.c.b16 %v171, %v170
    %v183 = vpack.c.b16 %v173, %v172
    %v184 = vpack.c.b16 %v175, %v174
    %v185 = vpack.c.b16 %v177, %v176
    %194 = vmatpush.bf16.msra.mxu0 %v185
    %195 = vmatpush.bf16.msra.mxu0 %v184
    %196 = vmatpush.bf16.msra.mxu0 %v183
    %197 = vmatpush.bf16.msra.mxu0 %v182
    %198 = vmatpush.bf16.msra.mxu0 %v181
    %199 = vmatpush.bf16.msra.mxu0 %v180
    %200 = vmatpush.bf16.msra.mxu0 %v179
    %201 = vmatpush.bf16.msra.mxu0 %v178
    %202 = vmatmul.bf16.gmra.mxu0 %v128
    %v203 = vpop.f32.mrf.mxu0
    %v204 = vadd.f32 %v145, %v203
    %v205 = vpop.f32.mrf.mxu0
    %206 = vdwg.mxu0
    %v207 = vmax.f32 %v204, 0.0
    %v208 = vperm.slane %v57, 0
    %v209 = vmul.f32 %v207, %v208
    %210 = vadd.xlane.f32.xlu0 %v209
    %v211 = vpop.xlane.xlu0 %210
    %s212 = sld [smem:[#allocation2]]
    %v213 = vstv %s212
    %v214 = vadd.f32 %v211, %v213
    %v216 = vlaneseq
    %v217 = vand.u32 %v216, 127
    %v218 = vperm.slane %v214, %v217
    %vm220 = vcmask 57344
    %221 = vst.msk [vmem:[%s6] sm:$0x1] %vm220, %v218
    // Predicated region
    $region34: #{value_network_forward.1} parent=1 // pred_check
      _
    $region35: #{value_network_forward.1} parent=1 // pred_check_branch
      %223 = sbr.rel (0) target = $region37
    $region36: #{value_network_forward.1} parent=1 // pred_region
      _
    $region37: #{value_network_forward.1} parent=1 // pred_fallthru
      _
    // Predicated region
    $region38: #{value_network_forward.1} parent=1 // pred_check
      _
    $region39: #{value_network_forward.1} parent=1 // pred_check_branch
      %225 = sbr.rel (0) target = $region41
    $region40: #{value_network_forward.1} parent=1 // pred_region
      _
    $region41: #{value_network_forward.1} parent=1 // pred_fallthru
      _
    %226 = vsyncpa [#allocation4], 1
    %227 = vsyncpa [#allocation6], 1

</llo_original>
